<compile_context>
chip_gen: v6e
topology: v6e:2x2x1
jax: 0.10.0
libtpu: 0.0.40
codegen_flags: <defaults>
</compile_context>

<pallas_src>
import math
import functools

import jax
import jax.numpy as jnp
from jax import lax
from jax.experimental import pallas as pl
from jax.experimental.pallas import tpu as pltpu


def _gating_context_kernel(x_ref, w_ref, gamma_ref, beta_ref, o_ref, *, tn, eps):
    # Resident activations, f32, (B, dim).  Loaded from VMEM each step (cheap).
    x = x_ref[...]

    # MXU matmul on bf16 operands with f32 accumulation:
    #   gates tile = x @ W[:, j*TN:(j+1)*TN]
    gates = jnp.dot(x.astype(jnp.bfloat16), w_ref[...],
                    preferred_element_type=jnp.float32)          # (B, TN) f32

    # BatchNorm1d (training mode, biased batch variance) on this column tile.
    # Two-pass (centered) statistics in f32 for robustness; reduction is over
    # the batch axis only, so per-tile BN is exact.
    inv_b = jnp.float32(1.0 / gates.shape[0])
    mean = jnp.sum(gates, axis=0, keepdims=True) * inv_b          # (1, TN)
    centered = gates - mean
    var = jnp.sum(centered * centered, axis=0, keepdims=True) * inv_b
    scale = gamma_ref[...] * lax.rsqrt(var + jnp.float32(eps))    # (1, TN)

    # sigmoid gate (EUP) and elementwise product with the matching x columns.
    g = jax.nn.sigmoid(centered * scale + beta_ref[...])          # (B, TN)

    if tn == x_ref.shape[1]:
        # Single full-width tile: the resident x *is* the matching columns.
        x_cols = x
    else:
        # Aligned dynamic lane slice of the resident x (TN is a multiple of 128
        # by construction, so the start offset is vreg-aligned).
        start = pl.multiple_of(pl.program_id(0) * tn, 128)
        x_cols = x_ref[:, pl.ds(start, tn)]

    o_ref[...] = (x_cols * g).astype(o_ref.dtype)


def _pick_col_tile(dim, batch, *, budget_bytes=36 << 20):
    """Column-tile width TN for streaming W.

    - dim not lane-divisible, or whole bf16 W small (<= 8 MiB, e.g. dim<=2048):
      a single full-width step -- at these sizes the kernel is dominated by the
      ~0.35 us/step fixed grid overhead, so fewer steps win.
    - otherwise: the largest multiple of 128 dividing dim whose working set
      (double-buffered bf16 W tile + f32 out tile + resident f32 x + BN params)
      fits a cross-generation VMEM budget (36 MiB: safe under v7x's 64 MiB
      physical VMEM after raising the scoped limit, and far under v5e/v6e).
    """
    if dim % 128 != 0 or dim * dim * 2 <= (8 << 20):
        return dim
    resident = 2 * batch * dim * 4 + 4 * dim * 4       # x (x2 buffers) + gamma/beta
    for tn in range(dim, 127, -128):
        if dim % tn:
            continue
        work = 2 * dim * tn * 2 + 2 * batch * tn * 4 + resident
        if work <= budget_bytes:
            return tn
    return 128


def gating_context(x, gating_weights, gamma, beta, *, eps=1e-5, col_tile=None):
    """x: (B, dim).  Returns (B, dim) float32.  Train-mode BatchNorm semantics."""
    B, dim = x.shape
    assert gating_weights.shape == (dim, dim)

    x = x.astype(jnp.float32)
    # Stream W to the MXU as bf16 (halves the dominant HBM traffic).  If the
    # caller already stores W in bf16 this cast is a no-op.
    w = (gating_weights if gating_weights.dtype == jnp.bfloat16
         else gating_weights.astype(jnp.bfloat16))
    gamma2d = jnp.asarray(gamma, jnp.float32).reshape(1, dim)
    beta2d = jnp.asarray(beta, jnp.float32).reshape(1, dim)

    tn = col_tile if col_tile is not None else _pick_col_tile(dim, B)
    assert dim % tn == 0 and (tn == dim or tn % 128 == 0)
    grid = (dim // tn,)

    # Working-set estimate: double-buffered bf16 W tile + f32 out tile,
    # resident f32 x (conservatively x2 buffers) + BN param tiles.
    vmem_need = 2 * dim * tn * 2 + 2 * B * tn * 4 + 2 * B * dim * 4 + 4 * 2 * tn * 4
    vmem_limit = int(min(max(vmem_need + (8 << 20), 32 << 20), 48 << 20))

    kernel = functools.partial(_gating_context_kernel, tn=tn, eps=eps)

    return pl.pallas_call(
        kernel,
        out_shape=jax.ShapeDtypeStruct((B, dim), jnp.float32),
        grid=grid,
        in_specs=[
            pl.BlockSpec((B, dim), lambda j: (0, 0)),    # x, resident (matmul LHS + product)
            pl.BlockSpec((dim, tn), lambda j: (0, j)),   # W column tile (bf16, pipelined DMA)
            pl.BlockSpec((1, tn), lambda j: (0, j)),     # BN gamma tile
            pl.BlockSpec((1, tn), lambda j: (0, j)),     # BN beta tile
        ],
        out_specs=pl.BlockSpec((B, tn), lambda j: (0, j)),
        compiler_params=pltpu.CompilerParams(
            dimension_semantics=("parallel",),           # megacore split on v7x
            vmem_limit_bytes=vmem_limit,
        ),
    )(x, w, gamma2d, beta2d)


def gating_context_ref(x, w, gamma, beta, eps=1e-5, x_matmul=None):
    """Pure-JAX reference (PyTorch train-mode BN math)."""
    x_mm = x if x_matmul is None else x_matmul
    gates = x_mm @ w
    mean = gates.mean(axis=0, keepdims=True)
    var = ((gates - mean) ** 2).mean(axis=0, keepdims=True)
    gates = (gates - mean) / jnp.sqrt(var + eps) * gamma[None, :] + beta[None, :]
    return x * jax.nn.sigmoid(gates)


if __name__ == "__main__":
    B, dim = 8, 256

    key = jax.random.PRNGKey(0)
    kx, kw = jax.random.split(key)

    # Deterministic parameter init mirroring the module's __init__:
    #   gating_weights = randn(dim, dim) / sqrt(dim); BatchNorm1d: gamma=1, beta=0.
    x = jax.random.normal(kx, (B, dim), dtype=jnp.float32)
    gating_weights = (
        jax.random.normal(kw, (dim, dim), dtype=jnp.float32) / math.sqrt(dim)
    )
    gamma = jnp.ones((dim,), dtype=jnp.float32)
    beta = jnp.zeros((dim,), dtype=jnp.float32)

    # (1) Default path: small dim -> single full-width column tile, grid=(1,).
    out = jax.block_until_ready(gating_context(x, gating_weights, gamma, beta))

    # (2) Forced multi-tile path (TN=128, grid=(2,)): exercises the pipelined W
    #     stream, per-tile BN, and the aligned dynamic lane slice of resident x
    #     that large dims will use.
    out_tiled = jax.block_until_ready(
        gating_context(x, gating_weights, gamma, beta, col_tile=128))

    # Reference with the same bf16 quantization of the matmul operands (isolates
    # structural correctness from the intended bf16-streaming approximation) ...
    w_q = gating_weights.astype(jnp.bfloat16).astype(jnp.float32)
    x_q = x.astype(jnp.bfloat16).astype(jnp.float32)
    ref_q = gating_context_ref(x, w_q, gamma, beta, x_matmul=x_q)
    # ... and the full-precision f32 reference (bounds the bf16 streaming error).
    ref_f32 = gating_context_ref(x, gating_weights, gamma, beta)

    assert out.shape == (B, dim) and out.dtype == jnp.float32
    assert out_tiled.shape == (B, dim)
    assert jnp.allclose(out, ref_q, atol=1e-4, rtol=1e-4)
    assert jnp.allclose(out_tiled, ref_q, atol=1e-4, rtol=1e-4)
    assert jnp.allclose(out, ref_f32, atol=2e-2, rtol=2e-2)

    print("KERNEL_OK")
</pallas_src>

<mosaic_0001>
module attributes {stable_mosaic.version = 11 : i64} {
  func.func @_gating_context_kernel(%arg0: i32, %arg1: memref<8x256xf32, #tpu.memory_space<vmem>>, %arg2: memref<256x256xbf16, #tpu.memory_space<vmem>>, %arg3: memref<1x256xf32, #tpu.memory_space<vmem>>, %arg4: memref<1x256xf32, #tpu.memory_space<vmem>>, %arg5: memref<8x256xf32, #tpu.memory_space<vmem>>) attributes {dimension_semantics = [#tpu.dimension_semantics<parallel>], iteration_bounds = array<i64: 1>, scalar_prefetch = 0 : i64, scratch_operands = 0 : i64, tpu.core_type = #tpu.core_type<tc>, window_params = [{pipeline_mode = #tpu.pipeline_mode<synchronous>, transform_indices = @transform_0, window_bounds = array<i64: 8, 256>}, {transform_indices = @transform_1, window_bounds = array<i64: 256, 256>}, {transform_indices = @transform_2, window_bounds = array<i64: 1, 256>}, {transform_indices = @transform_3, window_bounds = array<i64: 1, 256>}, {transform_indices = @transform_4, window_bounds = array<i64: 8, 256>}]} {
    %c0 = arith.constant 0 : index
    %c0_0 = arith.constant 0 : index
    %0 = vector.load %arg1[%c0, %c0_0] : memref<8x256xf32, #tpu.memory_space<vmem>>, vector<8x256xf32>
    %1 = arith.truncf %0 : vector<8x256xf32> to vector<8x256xbf16>
    %c0_1 = arith.constant 0 : index
    %c0_2 = arith.constant 0 : index
    %2 = vector.load %arg2[%c0_1, %c0_2] : memref<256x256xbf16, #tpu.memory_space<vmem>>, vector<256x256xbf16>
    %cst = arith.constant dense<0.000000e+00> : vector<8x256xf32>
    %3 = tpu.matmul %1, %2, %cst {dimension_numbers = #tpu.dot_dimension_numbers<[1], [0], [0], [1], [0, 0, 1, 1], [], []>} : vector<8x256xbf16>, vector<256x256xbf16>, vector<8x256xf32> -> vector<8x256xf32>
    %cst_3 = arith.constant dense<0.000000e+00> : vector<256xf32>
    %4 = vector.multi_reduction <add>, %3, %cst_3 [0] : vector<8x256xf32> to vector<256xf32>
    %5 = vector.shape_cast %4 : vector<256xf32> to vector<1x256xf32>
    %cst_4 = arith.constant 1.250000e-01 : f32
    %6 = vector.broadcast %cst_4 : f32 to vector<1x256xf32>
    %7 = arith.mulf %5, %6 : vector<1x256xf32>
    %8 = vector.broadcast %7 : vector<1x256xf32> to vector<8x256xf32>
    %9 = arith.subf %3, %8 : vector<8x256xf32>
    %10 = arith.mulf %9, %9 : vector<8x256xf32>
    %cst_5 = arith.constant dense<0.000000e+00> : vector<256xf32>
    %11 = vector.multi_reduction <add>, %10, %cst_5 [0] : vector<8x256xf32> to vector<256xf32>
    %12 = vector.shape_cast %11 : vector<256xf32> to vector<1x256xf32>
    %cst_6 = arith.constant 1.250000e-01 : f32
    %13 = vector.broadcast %cst_6 : f32 to vector<1x256xf32>
    %14 = arith.mulf %12, %13 : vector<1x256xf32>
    %c0_7 = arith.constant 0 : index
    %c0_8 = arith.constant 0 : index
    %15 = vector.load %arg3[%c0_7, %c0_8] : memref<1x256xf32, #tpu.memory_space<vmem>>, vector<1x256xf32>
    %cst_9 = arith.constant 9.99999974E-6 : f32
    %16 = vector.broadcast %cst_9 : f32 to vector<1x256xf32>
    %17 = arith.addf %14, %16 : vector<1x256xf32>
    %18 = math.rsqrt %17 : vector<1x256xf32>
    %19 = arith.mulf %15, %18 : vector<1x256xf32>
    %20 = vector.broadcast %19 : vector<1x256xf32> to vector<8x256xf32>
    %21 = arith.mulf %9, %20 : vector<8x256xf32>
    %c0_10 = arith.constant 0 : index
    %c0_11 = arith.constant 0 : index
    %22 = vector.load %arg4[%c0_10, %c0_11] : memref<1x256xf32, #tpu.memory_space<vmem>>, vector<1x256xf32>
    %23 = vector.broadcast %22 : vector<1x256xf32> to vector<8x256xf32>
    %24 = arith.addf %21, %23 : vector<8x256xf32>
    %25 = arith.negf %24 : vector<8x256xf32>
    %26 = math.exp %25 : vector<8x256xf32>
    %cst_12 = arith.constant 1.000000e+00 : f32
    %27 = vector.broadcast %cst_12 : f32 to vector<8x256xf32>
    %28 = arith.addf %27, %26 : vector<8x256xf32>
    %29 = arith.divf %27, %28 : vector<8x256xf32>
    %30 = arith.mulf %0, %29 : vector<8x256xf32>
    %c0_13 = arith.constant 0 : index
    %c0_14 = arith.constant 0 : index
    %31 = vector.load %arg5[%c0_13, %c0_14] : memref<8x256xf32, #tpu.memory_space<vmem>>, vector<8x256xf32>
    tpu.vector_store %arg5[%c0_13, %c0_14], %30 {strides = array<i32>} : memref<8x256xf32, #tpu.memory_space<vmem>>, vector<8x256xf32>,
    return
  }
  func.func @transform_0(%arg0: i32) -> (i32, i32) {
    %c0_i32 = arith.constant 0 : i32
    %c0_i32_0 = arith.constant 0 : i32
    %c0_i32_1 = arith.constant 0 : i32
    return %c0_i32, %c0_i32_0 : i32, i32
  }
  func.func @transform_1(%arg0: i32) -> (i32, i32) {
    %c0_i32 = arith.constant 0 : i32
    %c0_i32_0 = arith.constant 0 : i32
    return %c0_i32, %arg0 : i32, i32
  }
  func.func @transform_2(%arg0: i32) -> (i32, i32) {
    %c0_i32 = arith.constant 0 : i32
    %c0_i32_0 = arith.constant 0 : i32
    return %c0_i32, %arg0 : i32, i32
  }
  func.func @transform_3(%arg0: i32) -> (i32, i32) {
    %c0_i32 = arith.constant 0 : i32
    %c0_i32_0 = arith.constant 0 : i32
    return %c0_i32, %arg0 : i32, i32
  }
  func.func @transform_4(%arg0: i32) -> (i32, i32) {
    %c0_i32 = arith.constant 0 : i32
    %c0_i32_0 = arith.constant 0 : i32
    return %c0_i32, %arg0 : i32, i32
  }
}

</mosaic_0001>

<llo_original>
// kernel: tpu_custom_call.1
$region0: #{tpu_custom_call.1}
  #allocation0 [shape = 'u32[]', space=smem, size = 0x4, offset = 0x4, fixed_abs, tag = 'smem constant byte address 0x4 - core index']
  #allocation1 [shape = 'u32[144,128]{1,0:T(1,128)}', space=vmem, size = 0x12000, scoped, tag = 'internal scratch']
  %s0 = inlined_call_operand.hbm [shape: f32[8,256], index: 0, kind: input, shape index: {}]
  %s1 = inlined_call_operand.hbm [shape: bf16[256,256], index: 1, kind: input, shape index: {}]
  %s2 = inlined_call_operand.vmem [shape: f32[1,256], index: 2, kind: input, shape index: {}]
  %s3 = inlined_call_operand.vmem [shape: f32[1,256], index: 3, kind: input, shape index: {}]
  %s4 = inlined_call_operand.hbm [shape: f32[8,256], index: 4, kind: output, shape index: {}]
  %s5 = sld [smem:[#allocation0]]
  $region34: #{tpu_custom_call.1} parent=0
    _
  %s7 = ssub.s32 1, %s5
  %s8 = scalar_select 0, %s7, %s5
  $region1: #{tpu_custom_call.1} parent=0
    #allocation2 [shape = 'u8[8192]{0}', space=vmem, size = 0x2000, scoped, tag = 'input window, operand 0, single buffered']
    #allocation3 [shape = 's32[1]{0}', space=sflag, size = 0x4, scoped, tag = 'scoped memory for tpu_custom_call.1']
    #allocation4 [shape = 's32[1]{0}', space=sflag, size = 0x4, scoped, tag = 'scoped memory for tpu_custom_call.1']
    #allocation5 [shape = 'u8[131072]{0}', space=vmem, size = 0x20000, scoped, tag = 'input window, operand 1, single buffered']
    #allocation6 [shape = 's32[1]{0}', space=sflag, size = 0x4, scoped, tag = 'scoped memory for tpu_custom_call.1']
    #allocation7 [shape = 'u8[8192]{0}', space=vmem, size = 0x2000, scoped, tag = 'output window, operand 0, single buffered']
    %9 = vsyncpa [#allocation3], 0
    %10 = vsyncpa [#allocation6], 0
    %11 = vsyncpa [#allocation4], 0
    // Predicated region
    $region2: #{tpu_custom_call.1} parent=1 // pred_check
      _
    $region3: #{tpu_custom_call.1} parent=1 // pred_check_branch
      %13 = sbr.rel (0) target = $region5
    $region4: #{tpu_custom_call.1} parent=1 // pred_region
      %s15 = ssub.s32 256, 256
      %16 = vsyncadd [#allocation3], %s15
      %s18 = sshll.u32 [#allocation2], 4
      %s19 = int_to_ptr.vmem [resolvable:$true] %s18
      %21 = dma.hbm_to_vmem [thread:$0]  %s0, 256, %s19, [#allocation3]
    $region5: #{tpu_custom_call.1} parent=1 // pred_fallthru
      _
    // Predicated region
    $region6: #{tpu_custom_call.1} parent=1 // pred_check
      _
    $region7: #{tpu_custom_call.1} parent=1 // pred_check_branch
      %23 = sbr.rel (0) target = $region9
    $region8: #{tpu_custom_call.1} parent=1 // pred_region
      %s25 = ssub.s32 4096, 4096
      %26 = vsyncadd [#allocation6], %s25
      %s27 = sshll.u32 [#allocation5], 4
      %s28 = int_to_ptr.vmem [resolvable:$true] %s27
      %33 = dma.hbm_to_vmem [thread:$0]  %s1, 4096, %s28, [#allocation6], 128, 128, 8
    $region9: #{tpu_custom_call.1} parent=1 // pred_fallthru
      _
    // Predicated region
    $region10: #{tpu_custom_call.1} parent=1 // pred_check
      _
    $region11: #{tpu_custom_call.1} parent=1 // pred_check_branch
      %35 = sbr.rel (0) target = $region13
    $region12: #{tpu_custom_call.1} parent=1 // pred_region
      _
    $region13: #{tpu_custom_call.1} parent=1 // pred_fallthru
      _
    // Predicated region
    $region14: #{tpu_custom_call.1} parent=1 // pred_check
      _
    $region15: #{tpu_custom_call.1} parent=1 // pred_check_branch
      %37 = sbr.rel (0) target = $region17
    $region16: #{tpu_custom_call.1} parent=1 // pred_region
      _
    $region17: #{tpu_custom_call.1} parent=1 // pred_fallthru
      _
    // Predicated region
    $region18: #{tpu_custom_call.1} parent=1 // pred_check
      _
    $region19: #{tpu_custom_call.1} parent=1 // pred_check_branch
      %39 = sbr.rel (0) target = $region21
    $region20: #{tpu_custom_call.1} parent=1 // pred_region
      %40 = dma.done [#allocation3], 256
    $region21: #{tpu_custom_call.1} parent=1 // pred_fallthru
      _
    // Predicated region
    $region22: #{tpu_custom_call.1} parent=1 // pred_check
      _
    $region23: #{tpu_custom_call.1} parent=1 // pred_check_branch
      %42 = sbr.rel (0) target = $region25
    $region24: #{tpu_custom_call.1} parent=1 // pred_region
      %43 = dma.done [#allocation6], 4096
    $region25: #{tpu_custom_call.1} parent=1 // pred_fallthru
      _
    %v44 = vld [vmem:[#allocation2] sm:$0xff]
    %v45 = vld [vmem:[#allocation2 + $0x8] sm:$0xff]
    %v46 = vpack.c.bf16 %v44, %v44
    %v47 = vpack.c.bf16 %v45, %v45
    %v48 = vld [vmem:[#allocation5] sm:$0xff]
    %v49 = vld [vmem:[#allocation5 + $0x8] sm:$0xff]
    %v50 = vld [vmem:[#allocation5 + $0x10] sm:$0xff]
    %v51 = vld [vmem:[#allocation5 + $0x18] sm:$0xff]
    %v52 = vld [vmem:[#allocation5 + $0x20] sm:$0xff]
    %v53 = vld [vmem:[#allocation5 + $0x28] sm:$0xff]
    %v54 = vld [vmem:[#allocation5 + $0x30] sm:$0xff]
    %v55 = vld [vmem:[#allocation5 + $0x38] sm:$0xff]
    %v56 = vld [vmem:[#allocation5 + $0x40] sm:$0xff]
    %v57 = vld [vmem:[#allocation5 + $0x48] sm:$0xff]
    %v58 = vld [vmem:[#allocation5 + $0x50] sm:$0xff]
    %v59 = vld [vmem:[#allocation5 + $0x58] sm:$0xff]
    %v60 = vld [vmem:[#allocation5 + $0x60] sm:$0xff]
    %v61 = vld [vmem:[#allocation5 + $0x68] sm:$0xff]
    %v62 = vld [vmem:[#allocation5 + $0x70] sm:$0xff]
    %v63 = vld [vmem:[#allocation5 + $0x78] sm:$0xff]
    %v64 = vld [vmem:[#allocation5 + $0x80] sm:$0xff]
    %v65 = vld [vmem:[#allocation5 + $0x88] sm:$0xff]
    %v66 = vld [vmem:[#allocation5 + $0x90] sm:$0xff]
    %v67 = vld [vmem:[#allocation5 + $0x98] sm:$0xff]
    %v68 = vld [vmem:[#allocation5 + $0xa0] sm:$0xff]
    %v69 = vld [vmem:[#allocation5 + $0xa8] sm:$0xff]
    %v70 = vld [vmem:[#allocation5 + $0xb0] sm:$0xff]
    %v71 = vld [vmem:[#allocation5 + $0xb8] sm:$0xff]
    %v72 = vld [vmem:[#allocation5 + $0xc0] sm:$0xff]
    %v73 = vld [vmem:[#allocation5 + $0xc8] sm:$0xff]
    %v74 = vld [vmem:[#allocation5 + $0xd0] sm:$0xff]
    %v75 = vld [vmem:[#allocation5 + $0xd8] sm:$0xff]
    %v76 = vld [vmem:[#allocation5 + $0xe0] sm:$0xff]
    %v77 = vld [vmem:[#allocation5 + $0xe8] sm:$0xff]
    %v78 = vld [vmem:[#allocation5 + $0xf0] sm:$0xff]
    %v79 = vld [vmem:[#allocation5 + $0xf8] sm:$0xff]
    %v112 = vunpack.c.l.b16 %v48
    %v113 = vunpack.c.h.b16 %v48
    %v114 = vunpack.c.l.b16 %v49
    %v115 = vunpack.c.h.b16 %v49
    %v116 = vunpack.c.l.b16 %v50
    %v117 = vunpack.c.h.b16 %v50
    %v118 = vunpack.c.l.b16 %v51
    %v119 = vunpack.c.h.b16 %v51
    %v120 = vunpack.c.l.b16 %v52
    %v121 = vunpack.c.h.b16 %v52
    %v122 = vunpack.c.l.b16 %v53
    %v123 = vunpack.c.h.b16 %v53
    %v124 = vunpack.c.l.b16 %v54
    %v125 = vunpack.c.h.b16 %v54
    %v126 = vunpack.c.l.b16 %v55
    %v127 = vunpack.c.h.b16 %v55
    %v128 = vunpack.c.l.b16 %v56
    %v129 = vunpack.c.h.b16 %v56
    %v130 = vunpack.c.l.b16 %v57
    %v131 = vunpack.c.h.b16 %v57
    %v132 = vunpack.c.l.b16 %v58
    %v133 = vunpack.c.h.b16 %v58
    %v134 = vunpack.c.l.b16 %v59
    %v135 = vunpack.c.h.b16 %v59
    %v136 = vunpack.c.l.b16 %v60
    %v137 = vunpack.c.h.b16 %v60
    %v138 = vunpack.c.l.b16 %v61
    %v139 = vunpack.c.h.b16 %v61
    %v140 = vunpack.c.l.b16 %v62
    %v141 = vunpack.c.h.b16 %v62
    %v142 = vunpack.c.l.b16 %v63
    %v143 = vunpack.c.h.b16 %v63
    %v144 = vunpack.c.l.b16 %v64
    %v145 = vunpack.c.h.b16 %v64
    %v146 = vunpack.c.l.b16 %v65
    %v147 = vunpack.c.h.b16 %v65
    %v148 = vunpack.c.l.b16 %v66
    %v149 = vunpack.c.h.b16 %v66
    %v150 = vunpack.c.l.b16 %v67
    %v151 = vunpack.c.h.b16 %v67
    %v152 = vunpack.c.l.b16 %v68
    %v153 = vunpack.c.h.b16 %v68
    %v154 = vunpack.c.l.b16 %v69
    %v155 = vunpack.c.h.b16 %v69
    %v156 = vunpack.c.l.b16 %v70
    %v157 = vunpack.c.h.b16 %v70
    %v158 = vunpack.c.l.b16 %v71
    %v159 = vunpack.c.h.b16 %v71
    %v160 = vunpack.c.l.b16 %v72
    %v161 = vunpack.c.h.b16 %v72
    %v162 = vunpack.c.l.b16 %v73
    %v163 = vunpack.c.h.b16 %v73
    %v164 = vunpack.c.l.b16 %v74
    %v165 = vunpack.c.h.b16 %v74
    %v166 = vunpack.c.l.b16 %v75
    %v167 = vunpack.c.h.b16 %v75
    %v168 = vunpack.c.l.b16 %v76
    %v169 = vunpack.c.h.b16 %v76
    %v170 = vunpack.c.l.b16 %v77
    %v171 = vunpack.c.h.b16 %v77
    %v172 = vunpack.c.l.b16 %v78
    %v173 = vunpack.c.h.b16 %v78
    %v174 = vunpack.c.l.b16 %v79
    %v175 = vunpack.c.h.b16 %v79
    %v176 = vpack.c.b16 %v114, %v112
    %v177 = vpack.c.b16 %v115, %v113
    %v178 = vpack.c.b16 %v118, %v116
    %v179 = vpack.c.b16 %v119, %v117
    %v180 = vpack.c.b16 %v122, %v120
    %v181 = vpack.c.b16 %v123, %v121
    %v182 = vpack.c.b16 %v126, %v124
    %v183 = vpack.c.b16 %v127, %v125
    %v184 = vpack.c.b16 %v130, %v128
    %v185 = vpack.c.b16 %v131, %v129
    %v186 = vpack.c.b16 %v134, %v132
    %v187 = vpack.c.b16 %v135, %v133
    %v188 = vpack.c.b16 %v138, %v136
    %v189 = vpack.c.b16 %v139, %v137
    %v190 = vpack.c.b16 %v142, %v140
    %v191 = vpack.c.b16 %v143, %v141
    %v192 = vpack.c.b16 %v146, %v144
    %v193 = vpack.c.b16 %v147, %v145
    %v194 = vpack.c.b16 %v150, %v148
    %v195 = vpack.c.b16 %v151, %v149
    %v196 = vpack.c.b16 %v154, %v152
    %v197 = vpack.c.b16 %v155, %v153
    %v198 = vpack.c.b16 %v158, %v156
    %v199 = vpack.c.b16 %v159, %v157
    %v200 = vpack.c.b16 %v162, %v160
    %v201 = vpack.c.b16 %v163, %v161
    %v202 = vpack.c.b16 %v166, %v164
    %v203 = vpack.c.b16 %v167, %v165
    %v204 = vpack.c.b16 %v170, %v168
    %v205 = vpack.c.b16 %v171, %v169
    %v206 = vpack.c.b16 %v174, %v172
    %v207 = vpack.c.b16 %v175, %v173
    %240 = vmatprep.subr.bf16.mxu0 %v191
    %241 = vmatpush1.bf16.msra.mxu0 %v190
    %242 = vmatprep.subr.bf16.mxu0 %v189
    %243 = vmatpush1.bf16.msra.mxu0 %v188
    %244 = vmatprep.subr.bf16.mxu0 %v187
    %245 = vmatpush1.bf16.msra.mxu0 %v186
    %246 = vmatprep.subr.bf16.mxu0 %v185
    %247 = vmatpush1.bf16.msra.mxu0 %v184
    %248 = vmatprep.subr.bf16.mxu0 %v183
    %249 = vmatpush1.bf16.msra.mxu0 %v182
    %250 = vmatprep.subr.bf16.mxu0 %v181
    %251 = vmatpush1.bf16.msra.mxu0 %v180
    %252 = vmatprep.subr.bf16.mxu0 %v179
    %253 = vmatpush1.bf16.msra.mxu0 %v178
    %254 = vmatprep.subr.bf16.mxu0 %v177
    %255 = vmatpush1.bf16.msra.mxu0 %v176
    %256 = vmatprep.subr.bf16.mxu0 %v207
    %257 = vmatpush2.bf16.msra.mxu0 %v206
    %258 = vmatprep.subr.bf16.mxu0 %v205
    %259 = vmatpush2.bf16.msra.mxu0 %v204
    %260 = vmatprep.subr.bf16.mxu0 %v203
    %261 = vmatpush2.bf16.msra.mxu0 %v202
    %262 = vmatprep.subr.bf16.mxu0 %v201
    %263 = vmatpush2.bf16.msra.mxu0 %v200
    %264 = vmatprep.subr.bf16.mxu0 %v199
    %265 = vmatpush2.bf16.msra.mxu0 %v198
    %266 = vmatprep.subr.bf16.mxu0 %v197
    %267 = vmatpush2.bf16.msra.mxu0 %v196
    %268 = vmatprep.subr.bf16.mxu0 %v195
    %269 = vmatpush2.bf16.msra.mxu0 %v194
    %270 = vmatprep.subr.bf16.mxu0 %v193
    %271 = vmatpush2.bf16.msra.mxu0 %v192
    %272 = vmatprep.mubr.bf16.mxu0 %v47
    %273 = vmatmul.mubr.bf16.gmra.mxu0 %v46
    %v274 = vpop.f32.mrf.mxu0
    %v275 = vadd.f32 0.0, %v274
    %v276 = vpop.f32.mrf.mxu0
    %v277 = vadd.f32 0.0, %v276
    %v278 = vpop.f32.mrf.mxu0
    %v279 = vpop.f32.mrf.mxu0
    %280 = vdwg.mxu0
    %v281 = vrot.slane %v275, 4
    %v282 = vadd.f32 %v275, %v281
    %v283 = vrot.slane %v282, 2
    %v284 = vadd.f32 %v282, %v283
    %v285 = vrot.slane %v284, 1
    %v286 = vadd.f32 %v284, %v285
    %v287 = vrot.slane %v277, 4
    %v288 = vadd.f32 %v277, %v287
    %v289 = vrot.slane %v288, 2
    %v290 = vadd.f32 %v288, %v289
    %v291 = vrot.slane %v290, 1
    %v292 = vadd.f32 %v290, %v291
    %v293 = vmul.f32 %v286, 0.125
    %v294 = vmul.f32 %v292, 0.125
    %v295 = vsub.f32 %v275, %v293
    %v296 = vsub.f32 %v277, %v294
    %v297 = vmul.f32 %v295, %v295
    %v298 = vmul.f32 %v296, %v296
    %v299 = vrot.slane %v297, 4
    %v300 = vadd.f32 %v297, %v299
    %v301 = vrot.slane %v300, 2
    %v302 = vadd.f32 %v300, %v301
    %v303 = vrot.slane %v302, 1
    %v304 = vadd.f32 %v302, %v303
    %v305 = vrot.slane %v298, 4
    %v306 = vadd.f32 %v298, %v305
    %v307 = vrot.slane %v306, 2
    %v308 = vadd.f32 %v306, %v307
    %v309 = vrot.slane %v308, 1
    %v310 = vadd.f32 %v308, %v309
    %v311 = vmul.f32 %v304, 0.125
    %v312 = vmul.f32 %v310, 0.125
    %v313 = vld [vmem:[%s2] sm:$0x3]
    %v314 = vadd.f32 %v311, 1e-05
    %v315 = vadd.f32 %v312, 1e-05
    %v316 = vrsqrt.pop %v314
    %v317 = vrsqrt.pop %v315
    %v320 = vcombine.low %v316, %v317
    %v322 = vunpack.c.l.s4 1966171168
    %v323 = vunpack.c.0.s8 %v322
    %v324 = vlaneseq
    %v325 = vshrl.u32 %v324, 7
    %v326 = vsub.s32 %v323, %v325
    %v327 = vrot.slane %v320, %v326
    %v329 = vunpack.c.l.s4 1966171168
    %v330 = vunpack.c.0.s8 %v329
    %v331 = vlaneseq
    %v332 = vshrl.u32 %v331, 7
    %v333 = vsub.s32 %v330, %v332
    %v334 = vrot.slane %v327, %v333
    %v336 = vmul.f32 %v313, %v334
    %v338 = vlaneseq
    %v339 = vshrl.u32 %v338, 7
    %v340 = vsub.s32 0, %v339
    %v341 = vrot.slane %v336, %v340
    %v342 = vlaneseq
    %v343 = vshrl.u32 %v342, 7
    %v344 = vsub.s32 1, %v343
    %v345 = vrot.slane %v336, %v344
    %v348 = vmul.f32 %v295, %v341
    %v349 = vmul.f32 %v296, %v345
    %v350 = vld [vmem:[%s3] sm:$0x3]
    %v352 = vlaneseq
    %v353 = vshrl.u32 %v352, 7
    %v354 = vsub.s32 0, %v353
    %v355 = vrot.slane %v350, %v354
    %v356 = vlaneseq
    %v357 = vshrl.u32 %v356, 7
    %v358 = vsub.s32 1, %v357
    %v359 = vrot.slane %v350, %v358
    %v362 = vadd.f32 %v348, %v355
    %v363 = vadd.f32 %v349, %v359
    %v364 = vxor.u32 %v362, 2147483648
    %v365 = vxor.u32 %v363, 2147483648
    %v366 = vmul.f32 %v364, 1.442695
    %v367 = vpow.pop %v366
    %v368 = vmul.f32 %v365, 1.442695
    %v369 = vpow.pop %v368
    %v370 = vadd.f32 %v367, 1.0
    %v371 = vadd.f32 %v369, 1.0
    %v372 = vrcp.pop %v370
    %v373 = vmul.f32 1.0, %v372
    %v374 = vrcp.pop %v371
    %v375 = vmul.f32 1.0, %v374
    %v376 = vmul.f32 %v44, %v373
    %v377 = vmul.f32 %v45, %v375
    %378 = vst [vmem:[#allocation7] sm:$0xff] %v376
    %379 = vst [vmem:[#allocation7 + $0x8] sm:$0xff] %v377
    // Predicated region
    $region26: #{tpu_custom_call.1} parent=1 // pred_check
      _
    $region27: #{tpu_custom_call.1} parent=1 // pred_check_branch
      %381 = sbr.rel (0) target = $region29
    $region28: #{tpu_custom_call.1} parent=1 // pred_region
      %s383 = ssub.s32 256, 256
      %384 = vsyncadd [#allocation4], %s383
      %s386 = sshll.u32 [#allocation7], 4
      %s387 = int_to_ptr.vmem [resolvable:$true] %s386
      %389 = dma.vmem_to_hbm [thread:$0]  %s387, 256, %s4, [#allocation4]
    $region29: #{tpu_custom_call.1} parent=1 // pred_fallthru
      _
    // Predicated region
    $region30: #{tpu_custom_call.1} parent=1 // pred_check
      _
    $region31: #{tpu_custom_call.1} parent=1 // pred_check_branch
      %391 = sbr.rel (0) target = $region33
    $region32: #{tpu_custom_call.1} parent=1 // pred_region
      %392 = dma.done [#allocation4], 256
    $region33: #{tpu_custom_call.1} parent=1 // pred_fallthru
      _
    %393 = vsyncpa [#allocation3], 1
    %394 = vsyncpa [#allocation6], 1
    %395 = vsyncpa [#allocation4], 1

</llo_original>
